<compile_context>
chip_gen: v5e
topology: v5e:2x2
jax: 0.10.0
libtpu: 0.0.40
codegen_flags: <defaults>
</compile_context>

<pallas_src>
import numpy as np
import jax
import jax.numpy as jnp
from jax.experimental import pallas as pl
from jax.experimental.pallas import tpu as pltpu


def _round_up(x: int, m: int) -> int:
    return ((x + m - 1) // m) * m


# ----------------------------------------------------------------------------
# Basis construction (identical math to the PyTorch __init__, done in numpy).
# ----------------------------------------------------------------------------
def seasonality_templates(harmonics: int, backcast_size: int, forecast_size: int):
    frequency = np.append(
        np.zeros(1, dtype=float),
        np.arange(harmonics, harmonics / 2 * forecast_size, dtype=float) / harmonics,
    )[None, :]
    backcast_grid = (
        -2 * np.pi * (np.arange(backcast_size, dtype=float)[:, None] / forecast_size) * frequency
    )
    forecast_grid = (
        2 * np.pi * (np.arange(forecast_size, dtype=float)[:, None] / forecast_size) * frequency
    )
    backcast_basis = np.concatenate(
        [np.transpose(np.cos(backcast_grid)), np.transpose(np.sin(backcast_grid))], axis=0
    ).astype(np.float32)  # (H, Tb)
    forecast_basis = np.concatenate(
        [np.transpose(np.cos(forecast_grid)), np.transpose(np.sin(forecast_grid))], axis=0
    ).astype(np.float32)  # (H, Tf)
    return backcast_basis, forecast_basis


def make_projection_bases(harmonics: int, backcast_size: int,
                          forecast_size: int, out_features: int):
    """Two (K, .) projection matrices so that

         backcast = theta @ Wb                    == einsum('bp,pt->bt', theta[:, :H], bb)
         forecast = (theta @ Wf).reshape(B,Tf,Q)  == einsum('bpq,pt->btq',
                                                            theta[:, H:].reshape(B,H,Q), fb)

    Wb zero-pads the backcast basis to the full theta width; Wf = kron(fb, I_Q)
    folds the (B,H,Q)/(B,Tf,Q) relayouts into the basis so the kernel is a plain
    row-tiled matmul.  Nothing is padded to 128 — K, Tb, Tf*Q stay at their real
    sizes (Mosaic pads tiles internally; HBM traffic stays at the real sizes)."""
    bb, fb = seasonality_templates(harmonics, backcast_size, forecast_size)
    H, Tb = bb.shape
    _, Tf = fb.shape
    Q = out_features
    K = H * (1 + Q)

    Wb = np.zeros((K, Tb), dtype=np.float32)
    Wb[:H, :] = bb
    Wf = np.zeros((K, Tf * Q), dtype=np.float32)
    # theta column H + p*Q + q pairs with forecast output column t*Q + q.
    Wf[H:, :] = np.kron(fb, np.eye(Q, dtype=np.float32))

    meta = dict(H=H, Tb=Tb, Tf=Tf, Q=Q, K=K)
    return jnp.asarray(Wb), jnp.asarray(Wf), meta


# ----------------------------------------------------------------------------
# Pallas kernel: one theta row-tile, two small MXU matmuls, real-shape stores.
# ----------------------------------------------------------------------------
def _seasonality_kernel(theta_ref, wb_ref, wf_ref, back_ref, fore_ref):
    th = theta_ref[...]                                   # (TB, K) f32
    back_ref[...] = jnp.dot(th, wb_ref[...],
                            preferred_element_type=jnp.float32).astype(back_ref.dtype)
    fore_ref[...] = jnp.dot(th, wf_ref[...],
                            preferred_element_type=jnp.float32).astype(fore_ref.dtype)


def _vmem_capacity_bytes() -> int:
    try:
        return int(pltpu.get_tpu_info().vmem_capacity_bytes)
    except Exception:
        return 64 << 20   # v7x per-TC VMEM (smallest current part) — safe default


def _pick_block_b(batch: int, row_bytes: int, *, max_block: int = 512,
                  min_grid: int = 4, budget: int) -> int:
    """Batch-tile size.  Small batches use one exact block (a block equal to the
    full dim is exempt from the 8-sublane rule); larger batches use a
    multiple-of-8 tile sized so the grid has >= min_grid steps (keeps both v7x
    TensorCores busy under dimension_semantics=('parallel',)) and the
    double-buffered streamed tiles fit the VMEM budget."""
    if batch <= 32:
        return batch
    tb = min(max_block, _round_up(pl.cdiv(batch, min_grid), 8))
    while tb > 8 and 2 * tb * row_bytes > budget:
        tb = max(8, _round_up(tb // 2, 8))
    return tb


def make_seasonality_forward(harmonics: int, backcast_size: int,
                             forecast_size: int, out_features: int,
                             *, max_block_b: int = 512):
    """Returns jitted forward(theta) -> (backcast (B,Tb), forecast (B,Tf,Q))."""
    Wb, Wf, meta = make_projection_bases(harmonics, backcast_size,
                                         forecast_size, out_features)
    H, Tb, Tf, Q, K = meta["H"], meta["Tb"], meta["Tf"], meta["Q"], meta["K"]
    n_fore = Tf * Q
    vmem_cap = _vmem_capacity_bytes()

    @jax.jit
    def forward(theta):
        assert theta.ndim == 2 and theta.shape[1] == K
        B = theta.shape[0]
        out_dtype = theta.dtype

        row_bytes = 4 * (K + Tb + n_fore)            # f32 streamed bytes per batch row
        TB = _pick_block_b(B, row_bytes, max_block=max_block_b, budget=vmem_cap // 4)
        grid = (pl.cdiv(B, TB),)                     # ragged last block handled by Pallas

        # streamed tiles (double-buffered) + resident bases (double-buffered, tiny)
        tile_bytes = 2 * TB * row_bytes + 2 * 4 * K * (Tb + n_fore)
        vmem_limit = int(min(vmem_cap // 2, max(4 * tile_bytes, 8 << 20)))

        cost = pl.CostEstimate(
            flops=2 * B * K * (Tb + n_fore),
            transcendentals=0,
            bytes_accessed=4 * (B * K + K * (Tb + n_fore) + B * (Tb + n_fore)),
        )

        backcast, forecast_flat = pl.pallas_call(
            _seasonality_kernel,
            out_shape=(
                jax.ShapeDtypeStruct((B, Tb), out_dtype),
                jax.ShapeDtypeStruct((B, n_fore), out_dtype),
            ),
            grid=grid,
            in_specs=[
                pl.BlockSpec((TB, K), lambda i: (i, 0)),       # theta rows (streamed)
                pl.BlockSpec((K, Tb), lambda i: (0, 0)),       # backcast basis (resident)
                pl.BlockSpec((K, n_fore), lambda i: (0, 0)),   # kron forecast basis (resident)
            ],
            out_specs=(
                pl.BlockSpec((TB, Tb), lambda i: (i, 0)),
                pl.BlockSpec((TB, n_fore), lambda i: (i, 0)),
            ),
            compiler_params=pltpu.CompilerParams(
                dimension_semantics=("parallel",),
                vmem_limit_bytes=vmem_limit,
            ),
            cost_estimate=cost,
        )(theta, Wb, Wf)

        # (B, Tf*Q) is contiguous row-major -> this reshape is metadata-only.
        forecast = forecast_flat.reshape(B, Tf, Q)
        return backcast, forecast

    return forward, meta


# ----------------------------------------------------------------------------
# Demo / self-check
# ----------------------------------------------------------------------------
if __name__ == "__main__":
    # TODO(synk): only the SeasonalityBasis projection of NBEATS_TS is kernelized;
    # the MLP stacks, RevIN and the doubly-residual block loop stay as dense XLA ops.
    configs = [
        dict(harmonics=2, backcast_size=16, forecast_size=8, out_features=1, batch=4),
        dict(harmonics=2, backcast_size=16, forecast_size=8, out_features=2, batch=5),
        # multi-step (megacore-shardable) grid with a ragged final block:
        dict(harmonics=2, backcast_size=16, forecast_size=8, out_features=1, batch=300),
    ]
    key = jax.random.PRNGKey(0)

    for cfg in configs:
        fwd, meta = make_seasonality_forward(
            cfg["harmonics"], cfg["backcast_size"], cfg["forecast_size"], cfg["out_features"])
        H, Tb, Tf, Q, K = meta["H"], meta["Tb"], meta["Tf"], meta["Q"], meta["K"]
        B = cfg["batch"]

        key, sub = jax.random.split(key)
        theta = jax.random.normal(sub, (B, K), dtype=jnp.float32)

        backcast, forecast = fwd(theta)
        jax.block_until_ready((backcast, forecast))

        assert backcast.shape == (B, Tb)
        assert forecast.shape == (B, Tf, Q)

        # Reference: original PyTorch forward semantics, in float64.
        bb, fb = seasonality_templates(cfg["harmonics"], cfg["backcast_size"],
                                       cfg["forecast_size"])
        th64 = np.asarray(theta, dtype=np.float64)
        bc_ref = np.einsum("bp,pt->bt", th64[:, :H], bb.astype(np.float64))
        fc_ref = np.einsum("bpq,pt->btq", th64[:, H:].reshape(B, H, Q), fb.astype(np.float64))

        # Inputs, basis and accumulation are all f32 now (typically ~1e-5 off the
        # f64 reference); tolerance kept conservative w.r.t. the MXU's internal
        # f32-matmul precision mode.
        np.testing.assert_allclose(np.asarray(backcast, np.float64), bc_ref,
                                   rtol=2e-2, atol=3e-2)
        np.testing.assert_allclose(np.asarray(forecast, np.float64), fc_ref,
                                   rtol=2e-2, atol=3e-2)

    print("KERNEL_OK")
</pallas_src>

<mosaic_0001>
module attributes {stable_mosaic.version = 11 : i64} {
  func.func @_seasonality_kernel(%arg0: i32, %arg1: memref<4x28xf32, #tpu.memory_space<vmem>>, %arg2: memref<28x16xf32, #tpu.memory_space<vmem>>, %arg3: memref<28x8xf32, #tpu.memory_space<vmem>>, %arg4: memref<4x16xf32, #tpu.memory_space<vmem>>, %arg5: memref<4x8xf32, #tpu.memory_space<vmem>>) attributes {dimension_semantics = [#tpu.dimension_semantics<parallel>], iteration_bounds = array<i64: 1>, scalar_prefetch = 0 : i64, scratch_operands = 0 : i64, tpu.core_type = #tpu.core_type<tc>, window_params = [{transform_indices = @transform_0, window_bounds = array<i64: 4, 28>}, {pipeline_mode = #tpu.pipeline_mode<synchronous>, transform_indices = @transform_1, window_bounds = array<i64: 28, 16>}, {pipeline_mode = #tpu.pipeline_mode<synchronous>, transform_indices = @transform_2, window_bounds = array<i64: 28, 8>}, {transform_indices = @transform_3, window_bounds = array<i64: 4, 16>}, {transform_indices = @transform_4, window_bounds = array<i64: 4, 8>}]} {
    %c0 = arith.constant 0 : index
    %c0_0 = arith.constant 0 : index
    %0 = vector.load %arg1[%c0, %c0_0] : memref<4x28xf32, #tpu.memory_space<vmem>>, vector<4x28xf32>
    %c0_1 = arith.constant 0 : index
    %c0_2 = arith.constant 0 : index
    %1 = vector.load %arg2[%c0_1, %c0_2] : memref<28x16xf32, #tpu.memory_space<vmem>>, vector<28x16xf32>
    %cst = arith.constant dense<0.000000e+00> : vector<4x16xf32>
    %2 = tpu.matmul %0, %1, %cst {dimension_numbers = #tpu.dot_dimension_numbers<[1], [0], [0], [1], [0, 0, 1, 1], [], []>} : vector<4x28xf32>, vector<28x16xf32>, vector<4x16xf32> -> vector<4x16xf32>
    %c0_3 = arith.constant 0 : index
    %c0_4 = arith.constant 0 : index
    %3 = vector.load %arg4[%c0_3, %c0_4] : memref<4x16xf32, #tpu.memory_space<vmem>>, vector<4x16xf32>
    tpu.vector_store %arg4[%c0_3, %c0_4], %2 {strides = array<i32>} : memref<4x16xf32, #tpu.memory_space<vmem>>, vector<4x16xf32>,
    %c0_5 = arith.constant 0 : index
    %c0_6 = arith.constant 0 : index
    %4 = vector.load %arg3[%c0_5, %c0_6] : memref<28x8xf32, #tpu.memory_space<vmem>>, vector<28x8xf32>
    %cst_7 = arith.constant dense<0.000000e+00> : vector<4x8xf32>
    %5 = tpu.matmul %0, %4, %cst_7 {dimension_numbers = #tpu.dot_dimension_numbers<[1], [0], [0], [1], [0, 0, 1, 1], [], []>} : vector<4x28xf32>, vector<28x8xf32>, vector<4x8xf32> -> vector<4x8xf32>
    %c0_8 = arith.constant 0 : index
    %c0_9 = arith.constant 0 : index
    %6 = vector.load %arg5[%c0_8, %c0_9] : memref<4x8xf32, #tpu.memory_space<vmem>>, vector<4x8xf32>
    tpu.vector_store %arg5[%c0_8, %c0_9], %5 {strides = array<i32>} : memref<4x8xf32, #tpu.memory_space<vmem>>, vector<4x8xf32>,
    return
  }
  func.func @transform_0(%arg0: i32) -> (i32, i32) {
    %c0_i32 = arith.constant 0 : i32
    %c0_i32_0 = arith.constant 0 : i32
    return %arg0, %c0_i32 : i32, i32
  }
  func.func @transform_1(%arg0: i32) -> (i32, i32) {
    %c0_i32 = arith.constant 0 : i32
    %c0_i32_0 = arith.constant 0 : i32
    %c0_i32_1 = arith.constant 0 : i32
    return %c0_i32, %c0_i32_0 : i32, i32
  }
  func.func @transform_2(%arg0: i32) -> (i32, i32) {
    %c0_i32 = arith.constant 0 : i32
    %c0_i32_0 = arith.constant 0 : i32
    %c0_i32_1 = arith.constant 0 : i32
    return %c0_i32, %c0_i32_0 : i32, i32
  }
  func.func @transform_3(%arg0: i32) -> (i32, i32) {
    %c0_i32 = arith.constant 0 : i32
    %c0_i32_0 = arith.constant 0 : i32
    return %arg0, %c0_i32 : i32, i32
  }
  func.func @transform_4(%arg0: i32) -> (i32, i32) {
    %c0_i32 = arith.constant 0 : i32
    %c0_i32_0 = arith.constant 0 : i32
    return %arg0, %c0_i32 : i32, i32
  }
}

</mosaic_0001>

<llo_original>
// kernel: forward.1
$region0: #{forward.1}
  #allocation0 [shape = 'u32[]', space=smem, size = 0x4, offset = 0x4, fixed_abs, tag = 'smem constant byte address 0x4 - core index']
  #allocation1 [shape = 'u32[72,128]{1,0:T(1,128)}', space=vmem, size = 0x9000, scoped, tag = 'internal scratch']
  %s0 = inlined_call_operand.hbm [shape: f32[4,28], index: 0, kind: input, shape index: {}]
  %s1 = inlined_call_operand.hbm [shape: f32[28,16], index: 1, kind: input, shape index: {}]
  %s2 = inlined_call_operand.hbm [shape: f32[28,8], index: 2, kind: input, shape index: {}]
  %s3 = inlined_call_operand.hbm [shape: f32[4,16], index: 3, kind: output, shape index: {0}]
  %s4 = inlined_call_operand.hbm [shape: f32[4,8], index: 4, kind: output, shape index: {1}]
  %5 = xla_tuple %s3, %s4
  %s6 = sld [smem:[#allocation0]]
  $region42: #{forward.1} parent=0
    _
  %s8 = ssub.s32 1, %s6
  %s9 = scalar_select 0, %s8, %s6
  $region1: #{forward.1} parent=0
    #allocation2 [shape = 'u8[2048]{0}', space=vmem, size = 0x800, scoped, tag = 'input window, operand 0, single buffered']
    #allocation3 [shape = 's32[1]{0}', space=sflag, size = 0x4, scoped, tag = 'scoped memory for forward.1']
    #allocation4 [shape = 's32[1]{0}', space=sflag, size = 0x4, scoped, tag = 'scoped memory for forward.1']
    #allocation5 [shape = 'u8[16384]{0}', space=vmem, size = 0x4000, scoped, tag = 'input window, operand 1, single buffered']
    #allocation6 [shape = 's32[1]{0}', space=sflag, size = 0x4, scoped, tag = 'scoped memory for forward.1']
    #allocation7 [shape = 'u8[16384]{0}', space=vmem, size = 0x4000, scoped, tag = 'input window, operand 2, single buffered']
    #allocation8 [shape = 'u8[2048]{0}', space=vmem, size = 0x800, scoped, tag = 'output window, operand 0, single buffered']
    #allocation9 [shape = 'u8[2048]{0}', space=vmem, size = 0x800, scoped, tag = 'output window, operand 1, single buffered']
    #allocation10 [shape = 's32[1]{0}', space=sflag, size = 0x4, scoped, tag = 'scoped memory for forward.1']
    %10 = vsyncpa [#allocation3], 0
    %11 = vsyncpa [#allocation6], 0
    %12 = vsyncpa [#allocation4], 0
    %13 = vsyncpa [#allocation10], 0
    // Predicated region
    $region2: #{forward.1} parent=1 // pred_check
      _
    $region3: #{forward.1} parent=1 // pred_check_branch
      %15 = sbr.rel (0) target = $region5
    $region4: #{forward.1} parent=1 // pred_region
      %17 = vsyncadd [#allocation3], 0
      %s19 = sshll.u32 %s0, 4
      %s20 = int_to_ptr.hbm [resolvable:$true] %s19
      %s21 = sshll.u32 [#allocation2], 4
      %s22 = int_to_ptr.vmem [resolvable:$true] %s21
      %24 = dma.hbm_to_vmem [thread:$0]  %s20, 64, %s22, [#allocation3]
    $region5: #{forward.1} parent=1 // pred_fallthru
      _
    // Predicated region
    $region6: #{forward.1} parent=1 // pred_check
      _
    $region7: #{forward.1} parent=1 // pred_check_branch
      %26 = sbr.rel (0) target = $region9
    $region8: #{forward.1} parent=1 // pred_region
      %28 = vsyncadd [#allocation6], 0
      %s29 = sshll.u32 %s1, 4
      %s30 = int_to_ptr.hbm [resolvable:$true] %s29
      %s31 = sshll.u32 [#allocation5], 4
      %s32 = int_to_ptr.vmem [resolvable:$true] %s31
      %37 = dma.hbm_to_vmem [thread:$0]  %s30, 512, %s32, [#allocation6], 128, 128, 8
    $region9: #{forward.1} parent=1 // pred_fallthru
      _
    // Predicated region
    $region10: #{forward.1} parent=1 // pred_check
      _
    $region11: #{forward.1} parent=1 // pred_check_branch
      %39 = sbr.rel (0) target = $region13
    $region12: #{forward.1} parent=1 // pred_region
      %41 = vsyncadd [#allocation6], 0
      %s42 = sshll.u32 %s2, 4
      %s43 = int_to_ptr.hbm [resolvable:$true] %s42
      %s44 = sshll.u32 [#allocation7], 4
      %s45 = int_to_ptr.vmem [resolvable:$true] %s44
      %50 = dma.hbm_to_vmem [thread:$0]  %s43, 512, %s45, [#allocation6], 128, 128, 8
    $region13: #{forward.1} parent=1 // pred_fallthru
      _
    // Predicated region
    $region14: #{forward.1} parent=1 // pred_check
      _
    $region15: #{forward.1} parent=1 // pred_check_branch
      %52 = sbr.rel (0) target = $region17
    $region16: #{forward.1} parent=1 // pred_region
      %54 = dma.done [#allocation3], 64
    $region17: #{forward.1} parent=1 // pred_fallthru
      _
    // Predicated region
    $region18: #{forward.1} parent=1 // pred_check
      _
    $region19: #{forward.1} parent=1 // pred_check_branch
      %56 = sbr.rel (0) target = $region21
    $region20: #{forward.1} parent=1 // pred_region
      %58 = dma.done [#allocation6], 512
    $region21: #{forward.1} parent=1 // pred_fallthru
      _
    // Predicated region
    $region22: #{forward.1} parent=1 // pred_check
      _
    $region23: #{forward.1} parent=1 // pred_check_branch
      %60 = sbr.rel (0) target = $region25
    $region24: #{forward.1} parent=1 // pred_region
      %62 = dma.done [#allocation6], 512
    $region25: #{forward.1} parent=1 // pred_fallthru
      _
    %v63 = vld [vmem:[#allocation2] sm:$0xf]
    %v64 = vld [vmem:[#allocation5] sm:$0xff]
    %v65 = vld [vmem:[#allocation5 + $0x8] sm:$0xff]
    %v66 = vld [vmem:[#allocation5 + $0x10] sm:$0xff]
    %v67 = vld [vmem:[#allocation5 + $0x18] sm:$0xf]
    %vm68 = vcmask 228352
    %v70 = vsel %vm68, %v63, 0
    %vm72 = vcmask 1043456
    %v74 = vsel %vm72, %v67, 0
    %76 = vmatpush.msra.mxu0 0.0
    %77 = vmatpush.msra.mxu0 0.0
    %78 = vmatpush.msra.mxu0 0.0
    %79 = vmatpush.msra.mxu0 0.0
    %80 = vmatpush.msra.mxu0 0.0
    %81 = vmatpush.msra.mxu0 0.0
    %82 = vmatpush.msra.mxu0 0.0
    %83 = vmatpush.msra.mxu0 0.0
    %84 = vmatpush.msra.mxu0 0.0
    %85 = vmatpush.msra.mxu0 0.0
    %86 = vmatpush.msra.mxu0 0.0
    %87 = vmatpush.msra.mxu0 0.0
    %88 = vmatpush.msra.mxu0 %v74
    %89 = vmatpush.msra.mxu0 %v66
    %90 = vmatpush.msra.mxu0 %v65
    %91 = vmatpush.msra.mxu0 %v64
    %92 = vmatmul.f32.gmra.mxu0 %v70
    %v93 = vpop.f32.mrf.mxu0
    %v94 = vadd.f32 0.0, %v93
    %95 = vdwg.mxu0
    %vm96 = vcmask 125952
    %97 = vst.msk [vmem:[#allocation8] sm:$0xf] %vm96, %v94
    %v98 = vld [vmem:[#allocation7] sm:$0xff]
    %v99 = vld [vmem:[#allocation7 + $0x8] sm:$0xff]
    %v100 = vld [vmem:[#allocation7 + $0x10] sm:$0xff]
    %v101 = vld [vmem:[#allocation7 + $0x18] sm:$0xf]
    %v103 = vsel %vm72, %v101, 0
    %105 = vmatpush.msra.mxu0 0.0
    %106 = vmatpush.msra.mxu0 0.0
    %107 = vmatpush.msra.mxu0 0.0
    %108 = vmatpush.msra.mxu0 0.0
    %109 = vmatpush.msra.mxu0 0.0
    %110 = vmatpush.msra.mxu0 0.0
    %111 = vmatpush.msra.mxu0 0.0
    %112 = vmatpush.msra.mxu0 0.0
    %113 = vmatpush.msra.mxu0 0.0
    %114 = vmatpush.msra.mxu0 0.0
    %115 = vmatpush.msra.mxu0 0.0
    %116 = vmatpush.msra.mxu0 0.0
    %117 = vmatpush.msra.mxu0 %v103
    %118 = vmatpush.msra.mxu0 %v100
    %119 = vmatpush.msra.mxu0 %v99
    %120 = vmatpush.msra.mxu0 %v98
    %121 = vmatmul.f32.gmra.mxu0 %v70
    %v122 = vpop.f32.mrf.mxu0
    %v123 = vadd.f32 0.0, %v122
    %124 = vdwg.mxu0
    %vm125 = vcmask 60416
    %126 = vst.msk [vmem:[#allocation9] sm:$0xf] %vm125, %v123
    // Predicated region
    $region26: #{forward.1} parent=1 // pred_check
      _
    $region27: #{forward.1} parent=1 // pred_check_branch
      %128 = sbr.rel (0) target = $region29
    $region28: #{forward.1} parent=1 // pred_region
      %130 = vsyncadd [#allocation4], 0
      %s132 = sshll.u32 [#allocation8], 4
      %s133 = int_to_ptr.vmem [resolvable:$true] %s132
      %s134 = sshll.u32 %s3, 4
      %s135 = int_to_ptr.hbm [resolvable:$true] %s134
      %137 = dma.vmem_to_hbm [thread:$0]  %s133, 64, %s135, [#allocation4]
    $region29: #{forward.1} parent=1 // pred_fallthru
      _
    // Predicated region
    $region30: #{forward.1} parent=1 // pred_check
      _
    $region31: #{forward.1} parent=1 // pred_check_branch
      %139 = sbr.rel (0) target = $region33
    $region32: #{forward.1} parent=1 // pred_region
      %141 = vsyncadd [#allocation10], 0
      %s143 = sshll.u32 [#allocation9], 4
      %s144 = int_to_ptr.vmem [resolvable:$true] %s143
      %s145 = sshll.u32 %s4, 4
      %s146 = int_to_ptr.hbm [resolvable:$true] %s145
      %148 = dma.vmem_to_hbm [thread:$0]  %s144, 64, %s146, [#allocation10]
    $region33: #{forward.1} parent=1 // pred_fallthru
      _
    // Predicated region
    $region34: #{forward.1} parent=1 // pred_check
      _
    $region35: #{forward.1} parent=1 // pred_check_branch
      %150 = sbr.rel (0) target = $region37
    $region36: #{forward.1} parent=1 // pred_region
      %152 = dma.done [#allocation4], 64
    $region37: #{forward.1} parent=1 // pred_fallthru
      _
    // Predicated region
    $region38: #{forward.1} parent=1 // pred_check
      _
    $region39: #{forward.1} parent=1 // pred_check_branch
      %154 = sbr.rel (0) target = $region41
    $region40: #{forward.1} parent=1 // pred_region
      %156 = dma.done [#allocation10], 64
    $region41: #{forward.1} parent=1 // pred_fallthru
      _
    %157 = vsyncpa [#allocation3], 1
    %158 = vsyncpa [#allocation6], 1
    %159 = vsyncpa [#allocation4], 1
    %160 = vsyncpa [#allocation10], 1

</llo_original>
